<compile_context>
chip_gen: v5e
topology: v5e:2x2
jax: 0.10.0
libtpu: 0.0.40
codegen_flags: <defaults>
</compile_context>

<pallas_src>
import jax
import jax.numpy as jnp
from jax.experimental import pallas as pl
from jax.experimental.pallas import tpu as pltpu


def _leaky_relu(x, negative_slope=0.01):
    # matches F.leaky_relu default negative_slope=0.01
    return jnp.where(x > 0, x, negative_slope * x)


def _round_up(n, m):
    return ((n + m - 1) // m) * m


def policy_net_kernel(x_ref, w1_ref, b1_ref, w2_ref, b2_ref, w3_ref, b3_ref, o_ref):
    x = x_ref[...]

    # linear1 + leaky_relu   (hidden padded to 128 lanes; pad cols are zero)
    h1 = _leaky_relu(
        jnp.dot(x, w1_ref[...], preferred_element_type=jnp.float32) + b1_ref[...]
    )

    # linear2 + leaky_relu
    h2 = _leaky_relu(
        jnp.dot(h1, w2_ref[...], preferred_element_type=jnp.float32) + b2_ref[...]
    )

    # head (real num_actions columns only -> softmax unaffected by padding)
    logits = jnp.dot(h2, w3_ref[...], preferred_element_type=jnp.float32) + b3_ref[...]

    # stable softmax over the last dim (F.softmax on 2D -> dim=1)
    m = jnp.max(logits, axis=-1, keepdims=True)
    e = jnp.exp(logits - m)
    denom = jnp.sum(e, axis=-1, keepdims=True)
    o_ref[...] = (e * pl.reciprocal(denom, approx=False)).astype(o_ref.dtype)


def policy_network_gridworld(x, padded_params, *, batch_tile=512):
    """x: (B, input_size) float32.
    padded_params: dict of w1,b1,w2,b2,w3,b3 with hidden dim already padded
    (see pad_params). Weights are (in, out); biases are (1, out)."""
    w1, b1 = padded_params["w1"], padded_params["b1"]
    w2, b2 = padded_params["w2"], padded_params["b2"]
    w3, b3 = padded_params["w3"], padded_params["b3"]

    B, IN = x.shape
    H = w1.shape[1]          # padded hidden (128)
    A = w3.shape[1]          # num_actions (unpadded)

    # Batch tile: multiple of 8 sublanes, up to `batch_tile` rows per grid step.
    TB = min(batch_tile, _round_up(B, 8))
    B_pad = _round_up(B, TB)
    if B_pad != B:
        x = jnp.pad(x, ((0, B_pad - B), (0, 0)))

    grid = (B_pad // TB,)

    out = pl.pallas_call(
        policy_net_kernel,
        out_shape=jax.ShapeDtypeStruct((B_pad, A), jnp.float32),
        grid=grid,
        in_specs=[
            # activations: tiled over batch
            pl.BlockSpec((TB, IN), lambda i: (i, 0)),
            # weights/biases: constant block index -> resident in VMEM across steps
            pl.BlockSpec((IN, H), lambda i: (0, 0)),
            pl.BlockSpec((1, H), lambda i: (0, 0)),
            pl.BlockSpec((H, H), lambda i: (0, 0)),
            pl.BlockSpec((1, H), lambda i: (0, 0)),
            pl.BlockSpec((H, A), lambda i: (0, 0)),
            pl.BlockSpec((1, A), lambda i: (0, 0)),
        ],
        out_specs=pl.BlockSpec((TB, A), lambda i: (i, 0)),
        compiler_params=pltpu.CompilerParams(
            dimension_semantics=("parallel",),
        ),
    )(x, w1, b1, w2, b2, w3, b3)

    return out[:B]


def init_params(key, input_size, num_actions, hidden=50):
    """PyTorch-equivalent init: nn.Linear default U(-1/sqrt(fan_in), 1/sqrt(fan_in)).
    Weights stored as (in_features, out_features); biases as (1, out_features)."""
    ks = jax.random.split(key, 6)

    def linear(kw, kb, fan_in, fan_out):
        bound = 1.0 / jnp.sqrt(jnp.float32(fan_in))
        w = jax.random.uniform(kw, (fan_in, fan_out), jnp.float32, -bound, bound)
        b = jax.random.uniform(kb, (1, fan_out), jnp.float32, -bound, bound)
        return w, b

    w1, b1 = linear(ks[0], ks[1], input_size, hidden)
    w2, b2 = linear(ks[2], ks[3], hidden, hidden)
    w3, b3 = linear(ks[4], ks[5], hidden, num_actions)
    return {"w1": w1, "b1": b1, "w2": w2, "b2": b2, "w3": w3, "b3": b3}


def pad_params(params, hidden_pad=128):
    """Zero-pad the hidden dimension (50 -> hidden_pad) once, outside the kernel.
    Padded columns/rows are zero, so the forward math is unchanged."""
    w1, b1 = params["w1"], params["b1"]
    w2, b2 = params["w2"], params["b2"]
    w3, b3 = params["w3"], params["b3"]
    H = w1.shape[1]
    ph = hidden_pad - H
    assert ph >= 0
    return {
        "w1": jnp.pad(w1, ((0, 0), (0, ph))),
        "b1": jnp.pad(b1, ((0, 0), (0, ph))),
        "w2": jnp.pad(w2, ((0, ph), (0, ph))),
        "b2": jnp.pad(b2, ((0, 0), (0, ph))),
        "w3": jnp.pad(w3, ((0, ph), (0, 0))),
        "b3": b3,
    }


def reference_forward(x, params):
    """Pure-JAX reference (unpadded, hidden=50) for correctness check."""
    h1 = _leaky_relu(x @ params["w1"] + params["b1"])
    h2 = _leaky_relu(h1 @ params["w2"] + params["b2"])
    logits = h2 @ params["w3"] + params["b3"]
    return jax.nn.softmax(logits, axis=-1)


if __name__ == "__main__":
    key = jax.random.PRNGKey(0)
    k_params, k_x, k_x2 = jax.random.split(key, 3)

    batch = 2
    input_size = 16      # e.g. flattened 4x4 gridworld observation
    num_actions = 4

    params = init_params(k_params, input_size, num_actions, hidden=50)
    padded_params = pad_params(params, hidden_pad=128)

    # small-batch check (matches the PyTorch module shapes)
    x = jax.random.normal(k_x, (batch, input_size), jnp.float32)
    out = jax.block_until_ready(policy_network_gridworld(x, padded_params))
    ref = reference_forward(x, params)
    assert out.shape == (batch, num_actions)
    assert jnp.allclose(out, ref, atol=1e-5, rtol=1e-5), (out, ref)
    assert jnp.allclose(jnp.sum(out, axis=-1), 1.0, atol=1e-5)

    # larger batch to exercise the multi-step grid (weights stay VMEM-resident)
    xb = jax.random.normal(k_x2, (1024, input_size), jnp.float32)
    outb = jax.block_until_ready(policy_network_gridworld(xb, padded_params))
    refb = reference_forward(xb, params)
    assert outb.shape == (1024, num_actions)
    assert jnp.allclose(outb, refb, atol=2e-5, rtol=1e-4)
    assert jnp.allclose(jnp.sum(outb, axis=-1), 1.0, atol=1e-5)

    print("KERNEL_OK")
</pallas_src>

<mosaic_0001>
module attributes {stable_mosaic.version = 11 : i64} {
  func.func @policy_net_kernel(%arg0: i32, %arg1: memref<8x16xf32, #tpu.memory_space<vmem>>, %arg2: memref<16x128xf32, #tpu.memory_space<vmem>>, %arg3: memref<1x128xf32, #tpu.memory_space<vmem>>, %arg4: memref<128x128xf32, #tpu.memory_space<vmem>>, %arg5: memref<1x128xf32, #tpu.memory_space<vmem>>, %arg6: memref<128x4xf32, #tpu.memory_space<vmem>>, %arg7: memref<1x4xf32, #tpu.memory_space<vmem>>, %arg8: memref<8x4xf32, #tpu.memory_space<vmem>>) attributes {dimension_semantics = [#tpu.dimension_semantics<parallel>], iteration_bounds = array<i64: 1>, scalar_prefetch = 0 : i64, scratch_operands = 0 : i64, tpu.core_type = #tpu.core_type<tc>, window_params = [{transform_indices = @transform_0, window_bounds = array<i64: 8, 16>}, {pipeline_mode = #tpu.pipeline_mode<synchronous>, transform_indices = @transform_1, window_bounds = array<i64: 16, 128>}, {pipeline_mode = #tpu.pipeline_mode<synchronous>, transform_indices = @transform_2, window_bounds = array<i64: 1, 128>}, {pipeline_mode = #tpu.pipeline_mode<synchronous>, transform_indices = @transform_3, window_bounds = array<i64: 128, 128>}, {pipeline_mode = #tpu.pipeline_mode<synchronous>, transform_indices = @transform_4, window_bounds = array<i64: 1, 128>}, {pipeline_mode = #tpu.pipeline_mode<synchronous>, transform_indices = @transform_5, window_bounds = array<i64: 128, 4>}, {pipeline_mode = #tpu.pipeline_mode<synchronous>, transform_indices = @transform_6, window_bounds = array<i64: 1, 4>}, {transform_indices = @transform_7, window_bounds = array<i64: 8, 4>}]} {
    %c0 = arith.constant 0 : index
    %c0_0 = arith.constant 0 : index
    %0 = vector.load %arg1[%c0, %c0_0] : memref<8x16xf32, #tpu.memory_space<vmem>>, vector<8x16xf32>
    %c0_1 = arith.constant 0 : index
    %c0_2 = arith.constant 0 : index
    %1 = vector.load %arg2[%c0_1, %c0_2] : memref<16x128xf32, #tpu.memory_space<vmem>>, vector<16x128xf32>
    %cst = arith.constant dense<0.000000e+00> : vector<8x128xf32>
    %2 = tpu.matmul %0, %1, %cst {dimension_numbers = #tpu.dot_dimension_numbers<[1], [0], [0], [1], [0, 0, 1, 1], [], []>} : vector<8x16xf32>, vector<16x128xf32>, vector<8x128xf32> -> vector<8x128xf32>
    %c0_3 = arith.constant 0 : index
    %c0_4 = arith.constant 0 : index
    %3 = vector.load %arg3[%c0_3, %c0_4] : memref<1x128xf32, #tpu.memory_space<vmem>>, vector<1x128xf32>
    %4 = vector.broadcast %3 : vector<1x128xf32> to vector<8x128xf32>
    %5 = arith.addf %2, %4 : vector<8x128xf32>
    %cst_5 = arith.constant 0.000000e+00 : f32
    %6 = vector.broadcast %cst_5 : f32 to vector<8x128xf32>
    %7 = arith.cmpf ogt, %5, %6 : vector<8x128xf32>
    %cst_6 = arith.constant 0.00999999977 : f32
    %8 = vector.broadcast %cst_6 : f32 to vector<8x128xf32>
    %9 = arith.mulf %8, %5 : vector<8x128xf32>
    %10 = arith.select %7, %5, %9 : vector<8x128xi1>, vector<8x128xf32>
    %c0_7 = arith.constant 0 : index
    %c0_8 = arith.constant 0 : index
    %11 = vector.load %arg4[%c0_7, %c0_8] : memref<128x128xf32, #tpu.memory_space<vmem>>, vector<128x128xf32>
    %cst_9 = arith.constant dense<0.000000e+00> : vector<8x128xf32>
    %12 = tpu.matmul %10, %11, %cst_9 {dimension_numbers = #tpu.dot_dimension_numbers<[1], [0], [0], [1], [0, 0, 1, 1], [], []>} : vector<8x128xf32>, vector<128x128xf32>, vector<8x128xf32> -> vector<8x128xf32>
    %c0_10 = arith.constant 0 : index
    %c0_11 = arith.constant 0 : index
    %13 = vector.load %arg5[%c0_10, %c0_11] : memref<1x128xf32, #tpu.memory_space<vmem>>, vector<1x128xf32>
    %14 = vector.broadcast %13 : vector<1x128xf32> to vector<8x128xf32>
    %15 = arith.addf %12, %14 : vector<8x128xf32>
    %cst_12 = arith.constant 0.000000e+00 : f32
    %16 = vector.broadcast %cst_12 : f32 to vector<8x128xf32>
    %17 = arith.cmpf ogt, %15, %16 : vector<8x128xf32>
    %cst_13 = arith.constant 0.00999999977 : f32
    %18 = vector.broadcast %cst_13 : f32 to vector<8x128xf32>
    %19 = arith.mulf %18, %15 : vector<8x128xf32>
    %20 = arith.select %17, %15, %19 : vector<8x128xi1>, vector<8x128xf32>
    %c0_14 = arith.constant 0 : index
    %c0_15 = arith.constant 0 : index
    %21 = vector.load %arg6[%c0_14, %c0_15] : memref<128x4xf32, #tpu.memory_space<vmem>>, vector<128x4xf32>
    %cst_16 = arith.constant dense<0.000000e+00> : vector<8x4xf32>
    %22 = tpu.matmul %20, %21, %cst_16 {dimension_numbers = #tpu.dot_dimension_numbers<[1], [0], [0], [1], [0, 0, 1, 1], [], []>} : vector<8x128xf32>, vector<128x4xf32>, vector<8x4xf32> -> vector<8x4xf32>
    %c0_17 = arith.constant 0 : index
    %c0_18 = arith.constant 0 : index
    %23 = vector.load %arg7[%c0_17, %c0_18] : memref<1x4xf32, #tpu.memory_space<vmem>>, vector<1x4xf32>
    %24 = vector.broadcast %23 : vector<1x4xf32> to vector<8x4xf32>
    %25 = arith.addf %22, %24 : vector<8x4xf32>
    %cst_19 = arith.constant dense<0xFF800000> : vector<8xf32>
    %26 = vector.multi_reduction <maximumf>, %25, %cst_19 [1] : vector<8x4xf32> to vector<8xf32>
    %27 = vector.shape_cast %26 : vector<8xf32> to vector<8x1xf32>
    %28 = vector.broadcast %27 : vector<8x1xf32> to vector<8x4xf32>
    %29 = arith.subf %25, %28 : vector<8x4xf32>
    %30 = math.exp %29 : vector<8x4xf32>
    %cst_20 = arith.constant dense<0.000000e+00> : vector<8xf32>
    %31 = vector.multi_reduction <add>, %30, %cst_20 [1] : vector<8x4xf32> to vector<8xf32>
    %32 = vector.shape_cast %31 : vector<8xf32> to vector<8x1xf32>
    %33 = tpu.reciprocal %32 : vector<8x1xf32> -> vector<8x1xf32>
    %34 = vector.broadcast %33 : vector<8x1xf32> to vector<8x4xf32>
    %35 = arith.mulf %30, %34 : vector<8x4xf32>
    %c0_21 = arith.constant 0 : index
    %c0_22 = arith.constant 0 : index
    %36 = vector.load %arg8[%c0_21, %c0_22] : memref<8x4xf32, #tpu.memory_space<vmem>>, vector<8x4xf32>
    tpu.vector_store %arg8[%c0_21, %c0_22], %35 {strides = array<i32>} : memref<8x4xf32, #tpu.memory_space<vmem>>, vector<8x4xf32>,
    return
  }
  func.func @transform_0(%arg0: i32) -> (i32, i32) {
    %c0_i32 = arith.constant 0 : i32
    %c0_i32_0 = arith.constant 0 : i32
    return %arg0, %c0_i32 : i32, i32
  }
  func.func @transform_1(%arg0: i32) -> (i32, i32) {
    %c0_i32 = arith.constant 0 : i32
    %c0_i32_0 = arith.constant 0 : i32
    %c0_i32_1 = arith.constant 0 : i32
    return %c0_i32, %c0_i32_0 : i32, i32
  }
  func.func @transform_2(%arg0: i32) -> (i32, i32) {
    %c0_i32 = arith.constant 0 : i32
    %c0_i32_0 = arith.constant 0 : i32
    %c0_i32_1 = arith.constant 0 : i32
    return %c0_i32, %c0_i32_0 : i32, i32
  }
  func.func @transform_3(%arg0: i32) -> (i32, i32) {
    %c0_i32 = arith.constant 0 : i32
    %c0_i32_0 = arith.constant 0 : i32
    %c0_i32_1 = arith.constant 0 : i32
    return %c0_i32, %c0_i32_0 : i32, i32
  }
  func.func @transform_4(%arg0: i32) -> (i32, i32) {
    %c0_i32 = arith.constant 0 : i32
    %c0_i32_0 = arith.constant 0 : i32
    %c0_i32_1 = arith.constant 0 : i32
    return %c0_i32, %c0_i32_0 : i32, i32
  }
  func.func @transform_5(%arg0: i32) -> (i32, i32) {
    %c0_i32 = arith.constant 0 : i32
    %c0_i32_0 = arith.constant 0 : i32
    %c0_i32_1 = arith.constant 0 : i32
    return %c0_i32, %c0_i32_0 : i32, i32
  }
  func.func @transform_6(%arg0: i32) -> (i32, i32) {
    %c0_i32 = arith.constant 0 : i32
    %c0_i32_0 = arith.constant 0 : i32
    %c0_i32_1 = arith.constant 0 : i32
    return %c0_i32, %c0_i32_0 : i32, i32
  }
  func.func @transform_7(%arg0: i32) -> (i32, i32) {
    %c0_i32 = arith.constant 0 : i32
    %c0_i32_0 = arith.constant 0 : i32
    return %arg0, %c0_i32 : i32, i32
  }
}

</mosaic_0001>

<llo_original>
// kernel: tpu_custom_call.1
$region0: #{tpu_custom_call.1}
  #allocation0 [shape = 'u32[]', space=smem, size = 0x4, offset = 0x4, fixed_abs, tag = 'smem constant byte address 0x4 - core index']
  #allocation1 [shape = 'u32[72,128]{1,0:T(1,128)}', space=vmem, size = 0x9000, scoped, tag = 'internal scratch']
  %s0 = inlined_call_operand.hbm [shape: f32[8,16], index: 0, kind: input, shape index: {}]
  %s1 = inlined_call_operand.hbm [shape: f32[16,128], index: 1, kind: input, shape index: {}]
  %s2 = inlined_call_operand.vmem [shape: f32[1,128], index: 2, kind: input, shape index: {}]
  %s3 = inlined_call_operand.vmem [shape: f32[128,128], index: 3, kind: input, shape index: {}]
  %s4 = inlined_call_operand.vmem [shape: f32[1,128], index: 4, kind: input, shape index: {}]
  %s5 = inlined_call_operand.vmem [shape: f32[128,4], index: 5, kind: input, shape index: {}]
  %s6 = inlined_call_operand.vmem [shape: f32[1,4], index: 6, kind: input, shape index: {}]
  %s7 = inlined_call_operand.vmem [shape: f32[8,4], index: 7, kind: output, shape index: {}]
  %s8 = sld [smem:[#allocation0]]
  $region46: #{tpu_custom_call.1} parent=0
    _
  %s10 = ssub.s32 1, %s8
  %s11 = scalar_select 0, %s10, %s8
  $region1: #{tpu_custom_call.1} parent=0
    #allocation2 [shape = 'u8[4096]{0}', space=vmem, size = 0x1000, scoped, tag = 'input window, operand 0, single buffered']
    #allocation3 [shape = 's32[1]{0}', space=sflag, size = 0x4, scoped, tag = 'scoped memory for tpu_custom_call.1']
    #allocation4 [shape = 'u8[8192]{0}', space=vmem, size = 0x2000, scoped, tag = 'input window, operand 1, single buffered']
    #allocation5 [shape = 's32[1]{0}', space=sflag, size = 0x4, scoped, tag = 'scoped memory for tpu_custom_call.1']
    %12 = vsyncpa [#allocation3], 0
    %13 = vsyncpa [#allocation5], 0
    // Predicated region
    $region2: #{tpu_custom_call.1} parent=1 // pred_check
      _
    $region3: #{tpu_custom_call.1} parent=1 // pred_check_branch
      %15 = sbr.rel (0) target = $region5
    $region4: #{tpu_custom_call.1} parent=1 // pred_region
      %17 = vsyncadd [#allocation3], 0
      %s19 = sshll.u32 %s0, 4
      %s20 = int_to_ptr.hbm [resolvable:$true] %s19
      %s21 = sshll.u32 [#allocation2], 4
      %s22 = int_to_ptr.vmem [resolvable:$true] %s21
      %24 = dma.hbm_to_vmem [thread:$0]  %s20, 128, %s22, [#allocation3]
    $region5: #{tpu_custom_call.1} parent=1 // pred_fallthru
      _
    // Predicated region
    $region6: #{tpu_custom_call.1} parent=1 // pred_check
      _
    $region7: #{tpu_custom_call.1} parent=1 // pred_check_branch
      %26 = sbr.rel (0) target = $region9
    $region8: #{tpu_custom_call.1} parent=1 // pred_region
      %28 = vsyncadd [#allocation5], 0
      %s29 = sshll.u32 %s1, 4
      %s30 = int_to_ptr.hbm [resolvable:$true] %s29
      %s31 = sshll.u32 [#allocation4], 4
      %s32 = int_to_ptr.vmem [resolvable:$true] %s31
      %37 = dma.hbm_to_vmem [thread:$0]  %s30, 256, %s32, [#allocation5], 128, 128, 8
    $region9: #{tpu_custom_call.1} parent=1 // pred_fallthru
      _
    // Predicated region
    $region10: #{tpu_custom_call.1} parent=1 // pred_check
      _
    $region11: #{tpu_custom_call.1} parent=1 // pred_check_branch
      %39 = sbr.rel (0) target = $region13
    $region12: #{tpu_custom_call.1} parent=1 // pred_region
      _
    $region13: #{tpu_custom_call.1} parent=1 // pred_fallthru
      _
    // Predicated region
    $region14: #{tpu_custom_call.1} parent=1 // pred_check
      _
    $region15: #{tpu_custom_call.1} parent=1 // pred_check_branch
      %41 = sbr.rel (0) target = $region17
    $region16: #{tpu_custom_call.1} parent=1 // pred_region
      _
    $region17: #{tpu_custom_call.1} parent=1 // pred_fallthru
      _
    // Predicated region
    $region18: #{tpu_custom_call.1} parent=1 // pred_check
      _
    $region19: #{tpu_custom_call.1} parent=1 // pred_check_branch
      %43 = sbr.rel (0) target = $region21
    $region20: #{tpu_custom_call.1} parent=1 // pred_region
      _
    $region21: #{tpu_custom_call.1} parent=1 // pred_fallthru
      _
    // Predicated region
    $region22: #{tpu_custom_call.1} parent=1 // pred_check
      _
    $region23: #{tpu_custom_call.1} parent=1 // pred_check_branch
      %45 = sbr.rel (0) target = $region25
    $region24: #{tpu_custom_call.1} parent=1 // pred_region
      _
    $region25: #{tpu_custom_call.1} parent=1 // pred_fallthru
      _
    // Predicated region
    $region26: #{tpu_custom_call.1} parent=1 // pred_check
      _
    $region27: #{tpu_custom_call.1} parent=1 // pred_check_branch
      %47 = sbr.rel (0) target = $region29
    $region28: #{tpu_custom_call.1} parent=1 // pred_region
      _
    $region29: #{tpu_custom_call.1} parent=1 // pred_fallthru
      _
    // Predicated region
    $region30: #{tpu_custom_call.1} parent=1 // pred_check
      _
    $region31: #{tpu_custom_call.1} parent=1 // pred_check_branch
      %49 = sbr.rel (0) target = $region33
    $region32: #{tpu_custom_call.1} parent=1 // pred_region
      %51 = dma.done [#allocation3], 128
    $region33: #{tpu_custom_call.1} parent=1 // pred_fallthru
      _
    // Predicated region
    $region34: #{tpu_custom_call.1} parent=1 // pred_check
      _
    $region35: #{tpu_custom_call.1} parent=1 // pred_check_branch
      %53 = sbr.rel (0) target = $region37
    $region36: #{tpu_custom_call.1} parent=1 // pred_region
      %55 = dma.done [#allocation5], 256
    $region37: #{tpu_custom_call.1} parent=1 // pred_fallthru
      _
    %v56 = vld [vmem:[#allocation2] sm:$0xff]
    %v57 = vld [vmem:[#allocation4] sm:$0xff]
    %v58 = vld [vmem:[#allocation4 + $0x8] sm:$0xff]
    %v59 = vld [vmem:[%s2] sm:$0x1]
    %v61 = vperm.slane %v59, 0
    %vm63 = vcmask 130048
    %v65 = vsel %vm63, %v56, 0
    %67 = vmatpush.msra.mxu0 0.0
    %68 = vmatpush.msra.mxu0 0.0
    %69 = vmatpush.msra.mxu0 0.0
    %70 = vmatpush.msra.mxu0 0.0
    %71 = vmatpush.msra.mxu0 0.0
    %72 = vmatpush.msra.mxu0 0.0
    %73 = vmatpush.msra.mxu0 0.0
    %74 = vmatpush.msra.mxu0 0.0
    %75 = vmatpush.msra.mxu0 0.0
    %76 = vmatpush.msra.mxu0 0.0
    %77 = vmatpush.msra.mxu0 0.0
    %78 = vmatpush.msra.mxu0 0.0
    %79 = vmatpush.msra.mxu0 0.0
    %80 = vmatpush.msra.mxu0 0.0
    %81 = vmatpush.msra.mxu0 %v58
    %82 = vmatpush.msra.mxu0 %v57
    %83 = vmatmul.f32.gmra.mxu0 %v65
    %v84 = vpop.f32.mrf.mxu0
    %v85 = vadd.f32 %v61, %v84
    %86 = vdwg.mxu0
    %vm87 = vcmp.gt.f32.partialorder %v85, 0.0
    %v88 = vmul.f32 %v85, 0.01
    %v89 = vsel %vm87, %v85, %v88
    %v90 = vld [vmem:[%s3] sm:$0xff]
    %v91 = vld [vmem:[%s3 + $0x8] sm:$0xff]
    %v92 = vld [vmem:[%s3 + $0x10] sm:$0xff]
    %v93 = vld [vmem:[%s3 + $0x18] sm:$0xff]
    %v94 = vld [vmem:[%s3 + $0x20] sm:$0xff]
    %v95 = vld [vmem:[%s3 + $0x28] sm:$0xff]
    %v96 = vld [vmem:[%s3 + $0x30] sm:$0xff]
    %v97 = vld [vmem:[%s3 + $0x38] sm:$0xff]
    %v98 = vld [vmem:[%s3 + $0x40] sm:$0xff]
    %v99 = vld [vmem:[%s3 + $0x48] sm:$0xff]
    %v100 = vld [vmem:[%s3 + $0x50] sm:$0xff]
    %v101 = vld [vmem:[%s3 + $0x58] sm:$0xff]
    %v102 = vld [vmem:[%s3 + $0x60] sm:$0xff]
    %v103 = vld [vmem:[%s3 + $0x68] sm:$0xff]
    %v104 = vld [vmem:[%s3 + $0x70] sm:$0xff]
    %v105 = vld [vmem:[%s3 + $0x78] sm:$0xff]
    %v106 = vld [vmem:[%s4] sm:$0x1]
    %v108 = vperm.slane %v106, 0
    %110 = vmatpush.msra.mxu0 %v105
    %111 = vmatpush.msra.mxu0 %v104
    %112 = vmatpush.msra.mxu0 %v103
    %113 = vmatpush.msra.mxu0 %v102
    %114 = vmatpush.msra.mxu0 %v101
    %115 = vmatpush.msra.mxu0 %v100
    %116 = vmatpush.msra.mxu0 %v99
    %117 = vmatpush.msra.mxu0 %v98
    %118 = vmatpush.msra.mxu0 %v97
    %119 = vmatpush.msra.mxu0 %v96
    %120 = vmatpush.msra.mxu0 %v95
    %121 = vmatpush.msra.mxu0 %v94
    %122 = vmatpush.msra.mxu0 %v93
    %123 = vmatpush.msra.mxu0 %v92
    %124 = vmatpush.msra.mxu0 %v91
    %125 = vmatpush.msra.mxu0 %v90
    %126 = vmatmul.f32.gmra.mxu0 %v89
    %v127 = vpop.f32.mrf.mxu0
    %v128 = vadd.f32 %v108, %v127
    %129 = vdwg.mxu0
    %vm130 = vcmp.gt.f32.partialorder %v128, 0.0
    %v131 = vmul.f32 %v128, 0.01
    %v132 = vsel %vm130, %v128, %v131
    %v133 = vld [vmem:[%s5] sm:$0xff]
    %v134 = vld [vmem:[%s5 + $0x8] sm:$0xff]
    %v135 = vld [vmem:[%s5 + $0x10] sm:$0xff]
    %v136 = vld [vmem:[%s5 + $0x18] sm:$0xff]
    %v137 = vld [vmem:[%s5 + $0x20] sm:$0xff]
    %v138 = vld [vmem:[%s5 + $0x28] sm:$0xff]
    %v139 = vld [vmem:[%s5 + $0x30] sm:$0xff]
    %v140 = vld [vmem:[%s5 + $0x38] sm:$0xff]
    %v141 = vld [vmem:[%s5 + $0x40] sm:$0xff]
    %v142 = vld [vmem:[%s5 + $0x48] sm:$0xff]
    %v143 = vld [vmem:[%s5 + $0x50] sm:$0xff]
    %v144 = vld [vmem:[%s5 + $0x58] sm:$0xff]
    %v145 = vld [vmem:[%s5 + $0x60] sm:$0xff]
    %v146 = vld [vmem:[%s5 + $0x68] sm:$0xff]
    %v147 = vld [vmem:[%s5 + $0x70] sm:$0xff]
    %v148 = vld [vmem:[%s5 + $0x78] sm:$0xff]
    %v149 = vld [vmem:[%s6] sm:$0x1]
    %v151 = vperm.slane %v149, 0
    %153 = vmatpush.msra.mxu0 %v148
    %154 = vmatpush.msra.mxu0 %v147
    %155 = vmatpush.msra.mxu0 %v146
    %156 = vmatpush.msra.mxu0 %v145
    %157 = vmatpush.msra.mxu0 %v144
    %158 = vmatpush.msra.mxu0 %v143
    %159 = vmatpush.msra.mxu0 %v142
    %160 = vmatpush.msra.mxu0 %v141
    %161 = vmatpush.msra.mxu0 %v140
    %162 = vmatpush.msra.mxu0 %v139
    %163 = vmatpush.msra.mxu0 %v138
    %164 = vmatpush.msra.mxu0 %v137
    %165 = vmatpush.msra.mxu0 %v136
    %166 = vmatpush.msra.mxu0 %v135
    %167 = vmatpush.msra.mxu0 %v134
    %168 = vmatpush.msra.mxu0 %v133
    %169 = vmatmul.f32.gmra.mxu0 %v132
    %v170 = vpop.f32.mrf.mxu0
    %v171 = vadd.f32 %v151, %v170
    %172 = vdwg.mxu0
    %vm173 = vcmask 31744
    %v174 = vsel %vm173, %v171, -inf
    %175 = vmax.xlane.f32.xlu0 %v174
    %v176 = vpop.xlane.xlu0 %175
    %v177 = vsub.f32 %v171, %v176
    %v178 = vmul.f32 %v177, 1.442695
    %v179 = vpow.pop %v178
    %v180 = vsel %vm173, %v179, 0.0
    %181 = vadd.xlane.f32.xlu0 %v180
    %v182 = vpop.xlane.xlu0 %181
    %v183 = vrcp.pop %v182
    %v184 = vmul.f32 %v182, %v183
    %v185 = vsub.f32 1.0, %v184
    %v186 = vmul.f32 %v183, %v185
    %v187 = vadd.f32 %v183, %v186
    %vm188 = vweird.f32 %v182
    %vm189 = vweird.f32 %v183
    %vm190 = vmor %vm188, %vm189
    %v191 = vsel %vm190, %v183, %v187
    %v192 = vand.u32 2147483647, %v182
    %vm193 = vcmp.eq.f32.partialorder %v192, 8.507059e+37
    %v194 = vand.u32 %v182, 2147483648
    %v195 = vor.u32 1.1754944e-38, %v194
    %v196 = vsel %vm193, %v195, %v191
    %v197 = vmul.f32 %v179, %v196
    %198 = vst.msk [vmem:[%s7] sm:$0xff] %vm173, %v197
    // Predicated region
    $region38: #{tpu_custom_call.1} parent=1 // pred_check
      _
    $region39: #{tpu_custom_call.1} parent=1 // pred_check_branch
      %200 = sbr.rel (0) target = $region41
    $region40: #{tpu_custom_call.1} parent=1 // pred_region
      _
    $region41: #{tpu_custom_call.1} parent=1 // pred_fallthru
      _
    // Predicated region
    $region42: #{tpu_custom_call.1} parent=1 // pred_check
      _
    $region43: #{tpu_custom_call.1} parent=1 // pred_check_branch
      %202 = sbr.rel (0) target = $region45
    $region44: #{tpu_custom_call.1} parent=1 // pred_region
      _
    $region45: #{tpu_custom_call.1} parent=1 // pred_fallthru
      _
    %203 = vsyncpa [#allocation3], 1
    %204 = vsyncpa [#allocation5], 1

</llo_original>
